<compile_context>
chip_gen: v7x
topology: tpu7x:2x2x1
jax: 0.10.0
libtpu: 0.0.40
codegen_flags: <defaults>
</compile_context>

<pallas_src>
import math

import jax
import jax.numpy as jnp
from jax.experimental import pallas as pl
from jax.experimental.pallas import tpu as pltpu


def _minmax_scale_kernel(x_ref, inv_ref, bias_ref, o_ref):
    # out = (x - mn) / (mx - mn)  ==  x * inv + bias  with
    # inv = 1/(mx - mn), bias = -mn * inv precomputed in fp32 by the wrapper.
    x = x_ref[...].astype(jnp.float32)        # (tile_rows, tile_cols)
    inv = inv_ref[...]                        # (1, tile_cols) fp32, row-broadcast
    bias = bias_ref[...]                      # (1, tile_cols) fp32
    o_ref[...] = (x * inv + bias).astype(o_ref.dtype)


def _sublane_pack(dtype) -> int:
    """Rows per vreg sublane group: 8 for f32, 16 for bf16, 32 for 8-bit."""
    bits = jnp.dtype(dtype).itemsize * 8
    return max(8, (32 // bits) * 8)


def _choose_tiles(R, F, dtype, target_bytes=2 * 1024 * 1024):
    """Pick (tile_rows, tile_cols) giving ~target_bytes blocks, lane-dense."""
    itemsize = jnp.dtype(dtype).itemsize
    pack = _sublane_pack(dtype)

    # Lane (feature) tile: for wide 128-aligned F, take a large 128-multiple
    # divisor; otherwise take the full feature dim (block dim == array dim is
    # always legal, even when F is small or not 128-aligned).
    if F % 128 == 0 and F > 1024:
        tile_cols = 128
        for cand in (1024, 512, 256, 128):
            if F % cand == 0:
                tile_cols = cand
                break
    else:
        tile_cols = F

    # Row tile: multiple of the sublane pack, sized so each x/out block is
    # ~target_bytes.  With double-buffered input + output this stays well
    # under the default scoped-VMEM limit on v5e/v6e/v7x.
    rows_for_target = max(pack, target_bytes // max(1, tile_cols * itemsize))
    tile_rows = max(pack, (rows_for_target // pack) * pack)
    max_rows = -(-R // pack) * pack           # R rounded up to the pack size
    tile_rows = min(tile_rows, max_rows)

    # Prefer at least 2 grid steps so v7x's two TensorCores both get work
    # (no-op on the single-TC v5e/v6e).
    n_blocks = (-(-R // tile_rows)) * (-(-F // tile_cols))
    if n_blocks == 1 and R > 2 * pack:
        half_rows = -(-((R + 1) // 2) // pack) * pack
        tile_rows = min(tile_rows, half_rows)

    return tile_rows, tile_cols


def minmax_scale(x, scale_min, scale_max, *, tile_rows=None, tile_cols=None):
    """(x - scale_min) / (scale_max - scale_min), broadcast over the last dim."""
    orig_shape = x.shape
    F = orig_shape[-1]
    R = math.prod(orig_shape[:-1]) if len(orig_shape) > 1 else 1
    x2d = x.reshape(R, F)

    # Per-feature affine params, computed once in fp32 in the wrapper (tiny
    # (F,) vectors; keeps the kernel body to a single mul+add and matches
    # PyTorch's fp32 parameter math even for bf16 activations).
    mn = scale_min.reshape(-1).astype(jnp.float32)
    mx = scale_max.reshape(-1).astype(jnp.float32)
    inv = 1.0 / (mx - mn)         # inf/nan when max == min, same as PyTorch
    bias = -mn * inv
    inv2d = inv.reshape(1, F)
    bias2d = bias.reshape(1, F)

    auto_r, auto_c = _choose_tiles(R, F, x.dtype)
    tr = auto_r if tile_rows is None else tile_rows
    tc = auto_c if tile_cols is None else tile_cols

    grid = (-(-R // tr), -(-F // tc))
    out2d = pl.pallas_call(
        _minmax_scale_kernel,
        out_shape=jax.ShapeDtypeStruct((R, F), x.dtype),
        grid_spec=pltpu.PrefetchScalarGridSpec(
            num_scalar_prefetch=0,
            grid=grid,
            in_specs=[
                pl.BlockSpec((tr, tc), lambda i, j: (i, j)),
                pl.BlockSpec((1, tc), lambda i, j: (0, j)),
                pl.BlockSpec((1, tc), lambda i, j: (0, j)),
            ],
            out_specs=pl.BlockSpec((tr, tc), lambda i, j: (i, j)),
        ),
        compiler_params=pltpu.CompilerParams(
            dimension_semantics=("parallel", "parallel")),
    )(x2d, inv2d, bias2d)
    return out2d.reshape(orig_shape)


if __name__ == "__main__":
    key = jax.random.PRNGKey(0)
    k_x, k_mn, k_rng, k_x3 = jax.random.split(key, 4)

    # Small shapes: rows x features, features mapped to TPU lanes.
    R, F = 128, 256
    x = jax.random.normal(k_x, (R, F), dtype=jnp.float32)

    # Deterministic "parameters": per-feature min and strictly-positive range.
    scale_min = jax.random.normal(k_mn, (F,), dtype=jnp.float32)
    scale_max = scale_min + 0.5 + jax.random.uniform(k_rng, (F,), dtype=jnp.float32)

    out = jax.block_until_ready(minmax_scale(x, scale_min, scale_max))
    ref = (x - scale_min) / (scale_max - scale_min)
    assert out.shape == ref.shape and out.dtype == ref.dtype
    assert jnp.max(jnp.abs(out - ref)) < 1e-5

    # 3-D input (batch, seq, features) exercises the row-flattening path.
    x3 = jax.random.normal(k_x3, (2, 64, F), dtype=jnp.float32)
    out3 = jax.block_until_ready(minmax_scale(x3, scale_min, scale_max))
    ref3 = (x3 - scale_min) / (scale_max - scale_min)
    assert out3.shape == ref3.shape and out3.dtype == ref3.dtype
    assert jnp.max(jnp.abs(out3 - ref3)) < 1e-5

    print("KERNEL_OK")
</pallas_src>

<mosaic_0001>
module attributes {stable_mosaic.version = 11 : i64} {
  func.func @_minmax_scale_kernel(%arg0: i32, %arg1: i32, %arg2: memref<64x256xf32, #tpu.memory_space<vmem>>, %arg3: memref<1x256xf32, #tpu.memory_space<vmem>>, %arg4: memref<1x256xf32, #tpu.memory_space<vmem>>, %arg5: memref<64x256xf32, #tpu.memory_space<vmem>>) attributes {dimension_semantics = [#tpu.dimension_semantics<parallel>, #tpu.dimension_semantics<parallel>], iteration_bounds = array<i64: 2, 1>, scalar_prefetch = 0 : i64, scratch_operands = 0 : i64, tpu.core_type = #tpu.core_type<tc>, window_params = [{transform_indices = @transform_0, window_bounds = array<i64: 64, 256>}, {transform_indices = @transform_1, window_bounds = array<i64: 1, 256>}, {transform_indices = @transform_2, window_bounds = array<i64: 1, 256>}, {transform_indices = @transform_3, window_bounds = array<i64: 64, 256>}]} {
    %c0 = arith.constant 0 : index
    %c0_0 = arith.constant 0 : index
    %0 = vector.load %arg2[%c0, %c0_0] : memref<64x256xf32, #tpu.memory_space<vmem>>, vector<64x256xf32>
    %c0_1 = arith.constant 0 : index
    %c0_2 = arith.constant 0 : index
    %1 = vector.load %arg3[%c0_1, %c0_2] : memref<1x256xf32, #tpu.memory_space<vmem>>, vector<1x256xf32>
    %c0_3 = arith.constant 0 : index
    %c0_4 = arith.constant 0 : index
    %2 = vector.load %arg4[%c0_3, %c0_4] : memref<1x256xf32, #tpu.memory_space<vmem>>, vector<1x256xf32>
    %3 = vector.broadcast %1 : vector<1x256xf32> to vector<64x256xf32>
    %4 = arith.mulf %0, %3 : vector<64x256xf32>
    %5 = vector.broadcast %2 : vector<1x256xf32> to vector<64x256xf32>
    %6 = arith.addf %4, %5 : vector<64x256xf32>
    %c0_5 = arith.constant 0 : index
    %c0_6 = arith.constant 0 : index
    %7 = vector.load %arg5[%c0_5, %c0_6] : memref<64x256xf32, #tpu.memory_space<vmem>>, vector<64x256xf32>
    tpu.vector_store %arg5[%c0_5, %c0_6], %6 {strides = array<i32>} : memref<64x256xf32, #tpu.memory_space<vmem>>, vector<64x256xf32>,
    return
  }
  func.func @transform_0(%arg0: i32, %arg1: i32) -> (i32, i32) {
    %c0_i32 = arith.constant 0 : i32
    return %arg0, %arg1 : i32, i32
  }
  func.func @transform_1(%arg0: i32, %arg1: i32) -> (i32, i32) {
    %c0_i32 = arith.constant 0 : i32
    %c0_i32_0 = arith.constant 0 : i32
    return %c0_i32, %arg1 : i32, i32
  }
  func.func @transform_2(%arg0: i32, %arg1: i32) -> (i32, i32) {
    %c0_i32 = arith.constant 0 : i32
    %c0_i32_0 = arith.constant 0 : i32
    return %c0_i32, %arg1 : i32, i32
  }
  func.func @transform_3(%arg0: i32, %arg1: i32) -> (i32, i32) {
    %c0_i32 = arith.constant 0 : i32
    return %arg0, %arg1 : i32, i32
  }
}

</mosaic_0001>

<llo_original>
// kernel: tpu_custom_call.1
$region0: #{tpu_custom_call.1}
  #allocation0 [shape = 'u32[]', space=smem, size = 0x4, offset = 0x4, fixed_abs, tag = 'smem constant byte address 0x4 - core index']
  #allocation1 [shape = 'u32[144,128]{1,0:T(1,128)}', space=vmem, size = 0x12000, scoped, tag = 'internal scratch']
  %s0 = inlined_call_operand.hbm [shape: f32[128,256], index: 0, kind: input, shape index: {}]
  %s1 = inlined_call_operand.vmem [shape: f32[1,256], index: 1, kind: input, shape index: {}]
  %s2 = inlined_call_operand.vmem [shape: f32[1,256], index: 2, kind: input, shape index: {}]
  %s3 = inlined_call_operand.hbm [shape: f32[128,256], index: 3, kind: output, shape index: {}]
  %s4 = sld [smem:[#allocation0]]
  $region49: #{tpu_custom_call.1} parent=0
    _
  %s6 = ssub.s32 1, %s4
  %s7 = scalar_select 0, %s6, %s4
  $region1: #{tpu_custom_call.1} parent=0
    #allocation2 [shape = 'u8[131072]{0}', space=vmem, size = 0x20000, scoped, tag = 'input window, operand 0']
    #allocation3 [shape = 's32[2]{0}', space=sflag, size = 0x8, scoped, tag = 'scoped memory for tpu_custom_call.1']
    #allocation4 [shape = 's32[2]{0}', space=sflag, size = 0x8, scoped, tag = 'scoped memory for tpu_custom_call.1']
    #allocation5 [shape = 'u8[131072]{0}', space=vmem, size = 0x20000, scoped, tag = 'output window, operand 0']
    %8 = vsyncpa [#allocation3], 0
    %s9 = scalar_lea.sflag [#allocation3], 1
    %10 = vsyncpa %s9, 0
    %11 = vsyncpa [#allocation4], 0
    %s12 = scalar_lea.sflag [#allocation4], 1
    %13 = vsyncpa %s12, 0
    loop: start=0, step=1, limit=4
    $region2: #{tpu_custom_call.1} parent=1 // loop_pre_header
      _
    $region3: #{tpu_custom_call.1} parent=1 // loop_header
      %s15 = sphi 0, %s19
      %p16 = scmp.ge.s32.totalorder %s15, 4
      %s22 = sphi 0, %s34
      %s23 = sphi 0, %s30
      %s24 = sphi 0, %s22
      %s25 = sphi 0, %s23
      %s26 = sphi 0, %s24
      %s27 = sphi 0, %s25
      %s39 = sphi 0, %s41
      %s42 = sphi 0, %s39
      %s43 = sphi 0, %s42
      %s59 = sphi 0, %s43
      %s65 = sphi 0, %s67
      %s68 = sphi 0, %s65
      %s69 = sphi 0, %s68
      %s85 = sphi 0, %s69
      %s91 = sphi 0, %s93
      %s94 = sphi 0, %s91
      %s95 = sphi 0, %s94
      %s111 = sphi 0, %s95
      %s119 = sphi 0, %s121
      %s122 = sphi 0, %s119
      %s123 = sphi 0, %s122
      %s139 = sphi 0, %s123
    $region4: #{tpu_custom_call.1} parent=1 // loop_header_branch
      %18 = sbr.rel (%p16) target = $region8
    $region5: #{tpu_custom_call.1} parent=1 // loop_body
      %s20 = ssub.s32 %s15, 1
      %s21 = ssub.s32 %s15, 2
      %s28 = sadd.s32 1, %s23
      %p29 = scmp.ge.s32.totalorder %s28, 1
      %s30 = scalar_select %p29, 0, %s28
      %s31 = sadd.s32 1, %s22
      %s32 = scalar_select %p29, %s31, %s22
      %p33 = scmp.ge.s32.totalorder %s32, 2
      %s34 = scalar_select %p33, 0, %s32
      %s35 = ssub.s32 %s22, %s34
      %s36 = ssub.s32 %s23, %s30
      %s37 = sor.u32 %s35, %s36
      %p38 = scmp.eq.s32.totalorder %s37, 0
      %s40 = sadd.s32 %s39, 1
      %s41 = scalar_select %p38, %s39, %s40
      %p44 = pneg %p38
      %p45 = scmp.eq.s32.totalorder %s15, 1
      %p46 = por %p44, %p45
      %p47 = scmp.ne.s32.totalorder %s39, %s42
      %p48 = scmp.eq.s32.totalorder %s15, 0
      %p49 = por %p47, %p48
      %p50 = scmp.ne.s32.totalorder %s39, %s42
      %p51 = scmp.eq.s32.totalorder %s20, 1
      %p52 = por %p50, %p51
      %p53 = scmp.ne.s32.totalorder %s42, %s43
      %p54 = scmp.eq.s32.totalorder %s20, 0
      %p55 = por %p53, %p54
      %p56 = scmp.ne.s32.totalorder %s42, %s43
      %p57 = scmp.eq.s32.totalorder %s21, 1
      %p58 = por %p56, %p57
      %p60 = scmp.ne.s32.totalorder %s43, %s59
      %p61 = scmp.eq.s32.totalorder %s21, 0
      %p62 = por %p60, %p61
      %s63 = ssub.s32 %s23, %s30
      %p64 = scmp.eq.s32.totalorder %s63, 0
      %s66 = sadd.s32 %s65, 1
      %s67 = scalar_select %p64, %s65, %s66
      %p70 = pneg %p64
      %p71 = scmp.eq.s32.totalorder %s15, 1
      %p72 = por %p70, %p71
      %p73 = scmp.ne.s32.totalorder %s65, %s68
      %p74 = scmp.eq.s32.totalorder %s15, 0
      %p75 = por %p73, %p74
      %p76 = scmp.ne.s32.totalorder %s65, %s68
      %p77 = scmp.eq.s32.totalorder %s20, 1
      %p78 = por %p76, %p77
      %p79 = scmp.ne.s32.totalorder %s68, %s69
      %p80 = scmp.eq.s32.totalorder %s20, 0
      %p81 = por %p79, %p80
      %p82 = scmp.ne.s32.totalorder %s68, %s69
      %p83 = scmp.eq.s32.totalorder %s21, 1
      %p84 = por %p82, %p83
      %p86 = scmp.ne.s32.totalorder %s69, %s85
      %p87 = scmp.eq.s32.totalorder %s21, 0
      %p88 = por %p86, %p87
      %s89 = ssub.s32 %s23, %s30
      %p90 = scmp.eq.s32.totalorder %s89, 0
      %s92 = sadd.s32 %s91, 1
      %s93 = scalar_select %p90, %s91, %s92
      %p96 = pneg %p90
      %p97 = scmp.eq.s32.totalorder %s15, 1
      %p98 = por %p96, %p97
      %p99 = scmp.ne.s32.totalorder %s91, %s94
      %p100 = scmp.eq.s32.totalorder %s15, 0
      %p101 = por %p99, %p100
      %p102 = scmp.ne.s32.totalorder %s91, %s94
      %p103 = scmp.eq.s32.totalorder %s20, 1
      %p104 = por %p102, %p103
      %p105 = scmp.ne.s32.totalorder %s94, %s95
      %p106 = scmp.eq.s32.totalorder %s20, 0
      %p107 = por %p105, %p106
      %p108 = scmp.ne.s32.totalorder %s94, %s95
      %p109 = scmp.eq.s32.totalorder %s21, 1
      %p110 = por %p108, %p109
      %p112 = scmp.ne.s32.totalorder %s95, %s111
      %p113 = scmp.eq.s32.totalorder %s21, 0
      %p114 = por %p112, %p113
      %s115 = ssub.s32 %s22, %s34
      %s116 = ssub.s32 %s23, %s30
      %s117 = sor.u32 %s115, %s116
      %p118 = scmp.eq.s32.totalorder %s117, 0
      %s120 = sadd.s32 %s119, 1
      %s121 = scalar_select %p118, %s119, %s120
      %p124 = pneg %p118
      %p125 = scmp.eq.s32.totalorder %s15, 1
      %p126 = por %p124, %p125
      %p127 = scmp.ne.s32.totalorder %s119, %s122
      %p128 = scmp.eq.s32.totalorder %s15, 0
      %p129 = por %p127, %p128
      %p130 = scmp.ne.s32.totalorder %s119, %s122
      %p131 = scmp.eq.s32.totalorder %s20, 1
      %p132 = por %p130, %p131
      %p133 = scmp.ne.s32.totalorder %s122, %s123
      %p134 = scmp.eq.s32.totalorder %s20, 0
      %p135 = por %p133, %p134
      %p136 = scmp.ne.s32.totalorder %s122, %s123
      %p137 = scmp.eq.s32.totalorder %s21, 1
      %p138 = por %p136, %p137
      %p140 = scmp.ne.s32.totalorder %s123, %s139
      %p141 = scmp.eq.s32.totalorder %s21, 0
      %p142 = por %p140, %p141
      %p143 = scmp.le.s32.totalorder 1, %s15
      %p144 = scmp.lt.s32.totalorder %s15, 3
      %p145 = pnand %p143, %p144
      %p146 = pneg %p145
      // Predicated region
      $region9: #{tpu_custom_call.1} parent=5 // pred_check
        _
      $region10: #{tpu_custom_call.1} parent=5 // pred_check_branch
        %148 = sbr.rel (%p145) target = $region12
      $region11: #{tpu_custom_call.1} parent=5 // pred_region
        %s149 = ssub.s32 %s15, 1
        // Predicated region
        $region13: #{tpu_custom_call.1} parent=11 // pred_check
          %p150 = pneg %p81
        $region14: #{tpu_custom_call.1} parent=11 // pred_check_branch
          %152 = sbr.rel (%p150) target = $region16
        $region15: #{tpu_custom_call.1} parent=11 // pred_region
          %s153 = smul.u32 2, %s25
          %p154 = scmp.lt.s32.totalorder %s153, 1
          %s155 = scalar_select %p154, %s153, 1
          %s156 = scalar_lea.vmem %s1, %s155
          %s157 = smul.u32 2, %s25
        $region16: #{tpu_custom_call.1} parent=11 // pred_fallthru
          _
        // Predicated region
        $region17: #{tpu_custom_call.1} parent=11 // pred_check
          %p158 = pneg %p107
        $region18: #{tpu_custom_call.1} parent=11 // pred_check_branch
          %160 = sbr.rel (%p158) target = $region20
        $region19: #{tpu_custom_call.1} parent=11 // pred_region
          %s161 = smul.u32 2, %s25
          %p162 = scmp.lt.s32.totalorder %s161, 1
          %s163 = scalar_select %p162, %s161, 1
          %s164 = scalar_lea.vmem %s2, %s163
          %s165 = smul.u32 2, %s25
        $region20: #{tpu_custom_call.1} parent=11 // pred_fallthru
          _
      $region12: #{tpu_custom_call.1} parent=5 // pred_fallthru
        _
      %p166 = scmp.lt.s32.totalorder %s15, 2
      // Predicated region
      $region21: #{tpu_custom_call.1} parent=5 // pred_check
        %p167 = pneg %p166
      $region22: #{tpu_custom_call.1} parent=5 // pred_check_branch
        %169 = sbr.rel (%p167) target = $region24
      $region23: #{tpu_custom_call.1} parent=5 // pred_region
        // Predicated region
        $region25: #{tpu_custom_call.1} parent=23 // pred_check
          %p170 = pneg %p49
        $region26: #{tpu_custom_call.1} parent=23 // pred_check_branch
          %172 = sbr.rel (%p170) target = $region28
        $region27: #{tpu_custom_call.1} parent=23 // pred_region
          %s173 = sand.u32 %s39, 1
          %s174 = scalar_lea.sflag [#allocation3], %s173
          %s175 = sand.u32 %s39, 1
          %s176 = smul.addr %s175, 128
          %s177 = scalar_lea.vmem [#allocation2], %s176
          %s178 = smul.u32 8, %s22
          %s179 = smul.u32 2, %s23
          %s181 = ssub.s32 2048, 2048
          %182 = vsyncadd %s174, %s181
          %s183 = smul.addr %s178, 2
          %s184 = sadd.s32 %s179, %s183
          %s185 = smul.addr %s184, 128
          %s186 = scalar_lea.hbm %s0, %s185
          %s187 = sshll.u32 %s177, 4
          %s188 = int_to_ptr.vmem [resolvable:$true] %s187
          %193 = dma.hbm_to_vmem [thread:$0]  %s186, 2048, %s188, %s174, 256, 256, 16
        $region28: #{tpu_custom_call.1} parent=23 // pred_fallthru
          _
      $region24: #{tpu_custom_call.1} parent=5 // pred_fallthru
        _
      %p194 = scmp.le.s32.totalorder 1, %s15
      %p195 = scmp.lt.s32.totalorder %s15, 3
      %p196 = pnand %p194, %p195
      %p197 = pneg %p196
      // Predicated region
      $region29: #{tpu_custom_call.1} parent=5 // pred_check
        _
      $region30: #{tpu_custom_call.1} parent=5 // pred_check_branch
        %199 = sbr.rel (%p196) target = $region32
      $region31: #{tpu_custom_call.1} parent=5 // pred_region
        %s200 = ssub.s32 %s15, 1
        %s201 = sand.u32 %s42, 1
        %s202 = scalar_lea.sflag [#allocation3], %s201
        %s203 = sand.u32 %s42, 1
        %s204 = smul.addr %s203, 128
        %s205 = scalar_lea.vmem [#allocation2], %s204
        // Predicated region
        $region33: #{tpu_custom_call.1} parent=31 // pred_check
          %p206 = pneg %p55
        $region34: #{tpu_custom_call.1} parent=31 // pred_check_branch
          %208 = sbr.rel (%p206) target = $region36
        $region35: #{tpu_custom_call.1} parent=31 // pred_region
          %209 = dma.done %s202, 2048
        $region36: #{tpu_custom_call.1} parent=31 // pred_fallthru
          _
        %s210 = sand.u32 %s42, 1
        %s211 = scalar_lea.sflag [#allocation3], %s210
        %s212 = sand.u32 %s42, 1
        %s213 = smul.addr %s212, 128
        %s214 = scalar_lea.vmem [#allocation2], %s213
        %p215 = pneg %p55
        %p216 = pneg %p52
        %s217 = smul.u32 2, %s25
        %p218 = scmp.lt.s32.totalorder %s217, 1
        %s219 = scalar_select %p218, %s217, 1
        %s220 = scalar_lea.vmem %s1, %s219
        %p221 = pneg %p81
        %p222 = pneg %p78
        %s223 = smul.u32 2, %s25
        %p224 = scmp.lt.s32.totalorder %s223, 1
        %s225 = scalar_select %p224, %s223, 1
        %s226 = scalar_lea.vmem %s2, %s225
        %p227 = pneg %p107
        %p228 = pneg %p104
        %p229 = pneg %p135
        %p230 = pneg %p132
        %s231 = sand.u32 %s122, 1
        %s232 = scalar_lea.sflag [#allocation4], %s231
        %s233 = sand.u32 %s122, 1
        %s234 = smul.addr %s233, 128
        %s235 = scalar_lea.vmem [#allocation5], %s234
        %s236 = smul.u32 8, %s24
        %s237 = smul.u32 2, %s25
        %s238 = smul.u32 2, %s25
        %p239 = scmp.lt.s32.totalorder %s238, 1
        %s240 = scalar_select %p239, %s238, 1
        %s241 = scalar_lea.vmem %s1, %s240
        %s242 = smul.u32 2, %s25
        %s243 = smul.u32 2, %s25
        %p244 = scmp.lt.s32.totalorder %s243, 1
        %s245 = scalar_select %p244, %s243, 1
        %s246 = scalar_lea.vmem %s2, %s245
        %s247 = smul.u32 2, %s25
        %s248 = smul.u32 8, %s24
        %s249 = smul.u32 2, %s25
        %v250 = vld [vmem:[%s205] sm:$0xff]
        %v251 = vld [vmem:[%s205 + $0x8] sm:$0xff]
        %v252 = vld [vmem:[%s205 + $0x10] sm:$0xff]
        %v253 = vld [vmem:[%s205 + $0x18] sm:$0xff]
        %v254 = vld [vmem:[%s205 + $0x20] sm:$0xff]
        %v255 = vld [vmem:[%s205 + $0x28] sm:$0xff]
        %v256 = vld [vmem:[%s205 + $0x30] sm:$0xff]
        %v257 = vld [vmem:[%s205 + $0x38] sm:$0xff]
        %v258 = vld [vmem:[%s205 + $0x40] sm:$0xff]
        %v259 = vld [vmem:[%s205 + $0x48] sm:$0xff]
        %v260 = vld [vmem:[%s205 + $0x50] sm:$0xff]
        %v261 = vld [vmem:[%s205 + $0x58] sm:$0xff]
        %v262 = vld [vmem:[%s205 + $0x60] sm:$0xff]
        %v263 = vld [vmem:[%s205 + $0x68] sm:$0xff]
        %v264 = vld [vmem:[%s205 + $0x70] sm:$0xff]
        %v265 = vld [vmem:[%s205 + $0x78] sm:$0xff]
        %v266 = vld [vmem:[%s241] sm:$0x3]
        %v267 = vld [vmem:[%s246] sm:$0x3]
        %v269 = vlaneseq
        %v270 = vshrl.u32 %v269, 7
        %v271 = vsub.s32 0, %v270
        %v272 = vrot.slane %v266, %v271
        %v273 = vlaneseq
        %v274 = vshrl.u32 %v273, 7
        %v275 = vsub.s32 1, %v274
        %v276 = vrot.slane %v266, %v275
        %v279 = vmul.f32 %v250, %v272
        %v280 = vmul.f32 %v251, %v276
        %v281 = vmul.f32 %v252, %v272
        %v282 = vmul.f32 %v253, %v276
        %v283 = vmul.f32 %v254, %v272
        %v284 = vmul.f32 %v255, %v276
        %v285 = vmul.f32 %v256, %v272
        %v286 = vmul.f32 %v257, %v276
        %v287 = vmul.f32 %v258, %v272
        %v288 = vmul.f32 %v259, %v276
        %v289 = vmul.f32 %v260, %v272
        %v290 = vmul.f32 %v261, %v276
        %v291 = vmul.f32 %v262, %v272
        %v292 = vmul.f32 %v263, %v276
        %v293 = vmul.f32 %v264, %v272
        %v294 = vmul.f32 %v265, %v276
        %v296 = vlaneseq
        %v297 = vshrl.u32 %v296, 7
        %v298 = vsub.s32 0, %v297
        %v299 = vrot.slane %v267, %v298
        %v300 = vlaneseq
        %v301 = vshrl.u32 %v300, 7
        %v302 = vsub.s32 1, %v301
        %v303 = vrot.slane %v267, %v302
        %v306 = vadd.f32 %v279, %v299
        %v307 = vadd.f32 %v280, %v303
        %v308 = vadd.f32 %v281, %v299
        %v309 = vadd.f32 %v282, %v303
        %v310 = vadd.f32 %v283, %v299
        %v311 = vadd.f32 %v284, %v303
        %v312 = vadd.f32 %v285, %v299
        %v313 = vadd.f32 %v286, %v303
        %v314 = vadd.f32 %v287, %v299
        %v315 = vadd.f32 %v288, %v303
        %v316 = vadd.f32 %v289, %v299
        %v317 = vadd.f32 %v290, %v303
        %v318 = vadd.f32 %v291, %v299
        %v319 = vadd.f32 %v292, %v303
        %v320 = vadd.f32 %v293, %v299
        %v321 = vadd.f32 %v294, %v303
        %322 = vst [vmem:[%s235] sm:$0xff] %v306
        %323 = vst [vmem:[%s235 + $0x8] sm:$0xff] %v307
        %324 = vst [vmem:[%s235 + $0x10] sm:$0xff] %v308
        %325 = vst [vmem:[%s235 + $0x18] sm:$0xff] %v309
        %326 = vst [vmem:[%s235 + $0x20] sm:$0xff] %v310
        %327 = vst [vmem:[%s235 + $0x28] sm:$0xff] %v311
        %328 = vst [vmem:[%s235 + $0x30] sm:$0xff] %v312
        %329 = vst [vmem:[%s235 + $0x38] sm:$0xff] %v313
        %330 = vst [vmem:[%s235 + $0x40] sm:$0xff] %v314
        %331 = vst [vmem:[%s235 + $0x48] sm:$0xff] %v315
        %332 = vst [vmem:[%s235 + $0x50] sm:$0xff] %v316
        %333 = vst [vmem:[%s235 + $0x58] sm:$0xff] %v317
        %334 = vst [vmem:[%s235 + $0x60] sm:$0xff] %v318
        %335 = vst [vmem:[%s235 + $0x68] sm:$0xff] %v319
        %336 = vst [vmem:[%s235 + $0x70] sm:$0xff] %v320
        %337 = vst [vmem:[%s235 + $0x78] sm:$0xff] %v321
        %s338 = sand.u32 %s122, 1
        %s339 = scalar_lea.sflag [#allocation4], %s338
        %s340 = sand.u32 %s122, 1
        %s341 = smul.addr %s340, 128
        %s342 = scalar_lea.vmem [#allocation5], %s341
        // Predicated region
        $region37: #{tpu_custom_call.1} parent=31 // pred_check
          %p343 = pneg %p132
        $region38: #{tpu_custom_call.1} parent=31 // pred_check_branch
          %345 = sbr.rel (%p343) target = $region40
        $region39: #{tpu_custom_call.1} parent=31 // pred_region
          %s346 = smul.u32 8, %s24
          %s347 = smul.u32 2, %s25
          %s349 = ssub.s32 2048, 2048
          %350 = vsyncadd %s339, %s349
          %s351 = smul.addr %s346, 2
          %s352 = sadd.s32 %s347, %s351
          %s353 = smul.addr %s352, 128
          %s354 = scalar_lea.hbm %s3, %s353
          %s355 = sshll.u32 %s342, 4
          %s356 = int_to_ptr.vmem [resolvable:$true] %s355
          %361 = dma.vmem_to_hbm [thread:$0]  %s356, 2048, %s354, %s339, 256, 256, 16
        $region40: #{tpu_custom_call.1} parent=31 // pred_fallthru
          _
      $region32: #{tpu_custom_call.1} parent=5 // pred_fallthru
        _
      %p362 = scmp.le.s32.totalorder 2, %s15
      // Predicated region
      $region41: #{tpu_custom_call.1} parent=5 // pred_check
        %p363 = pneg %p362
      $region42: #{tpu_custom_call.1} parent=5 // pred_check_branch
        %365 = sbr.rel (%p363) target = $region44
      $region43: #{tpu_custom_call.1} parent=5 // pred_region
        %s366 = ssub.s32 %s15, 2
        // Predicated region
        $region45: #{tpu_custom_call.1} parent=43 // pred_check
          %p367 = pneg %p138
        $region46: #{tpu_custom_call.1} parent=43 // pred_check_branch
          %369 = sbr.rel (%p367) target = $region48
        $region47: #{tpu_custom_call.1} parent=43 // pred_region
          %s370 = sand.u32 %s123, 1
          %s371 = scalar_lea.sflag [#allocation4], %s370
          %s372 = sand.u32 %s123, 1
          %s373 = smul.addr %s372, 128
          %s374 = scalar_lea.vmem [#allocation5], %s373
          %375 = dma.done %s371, 2048
        $region48: #{tpu_custom_call.1} parent=43 // pred_fallthru
          _
      $region44: #{tpu_custom_call.1} parent=5 // pred_fallthru
        _
    $region6: #{tpu_custom_call.1} parent=1 // loop_footer
      %s19 = sadd.s32 1, %s15
    $region7: #{tpu_custom_call.1} parent=1 // loop_footer_branch
      %14 = sbr.rel target = $region3
    $region8: #{tpu_custom_call.1} parent=1 // loop_exit
      _
    %376 = vsyncpa [#allocation3], 1
    %s377 = scalar_lea.sflag [#allocation3], 1
    %378 = vsyncpa %s377, 1
    %379 = vsyncpa [#allocation4], 1
    %s380 = scalar_lea.sflag [#allocation4], 1
    %381 = vsyncpa %s380, 1

</llo_original>
